<compile_context>
chip_gen: v6e
topology: v6e:2x2x1
jax: 0.10.0
libtpu: 0.0.40
codegen_flags: <defaults>
</compile_context>

<pallas_src>
import functools

import jax
import jax.numpy as jnp
from jax.experimental import pallas as pl
from jax.experimental.pallas import tpu as pltpu

_LANE = 128
_SUBLANE = 8
_EPS = 1e-5

# Per-input, per-pipeline-buffer tile budget and explicit scoped-VMEM limit.
# 2 inputs x 2 buffers x 8 MiB = 32 MiB of input buffering, comfortably inside
# the 48 MiB limit on every generation (v7x physical = 64 MiB; v5e/v6e = 128).
_TILE_BYTES = 8 * 1024 * 1024
_VMEM_LIMIT_BYTES = 48 * 1024 * 1024


def _round_up(x: int, m: int) -> int:
    return (x + m - 1) // m * m


def _choose_tiles(B, C, itemsize, tile_budget):
    """Pick (tb, tc, grid_b, grid_c) for the (batch, class) grid."""

    def balance_tb(tb):
        # Megacore balance: aim for ~8 roughly-equal blocks on the 'parallel'
        # batch axis so both v7x TensorCores get balanced work.
        tb = min(tb, B)
        if B > _SUBLANE:
            desired = min(8, pl.cdiv(B, _SUBLANE))
            tb = min(tb, max(_SUBLANE, _round_up(pl.cdiv(B, desired), _SUBLANE)))
        return B if tb >= B else tb

    if _SUBLANE * C * itemsize <= tile_budget:
        # Full class dim fits in one block alongside >= 8 batch rows.
        tc = C
        tb = max(_SUBLANE, (tile_budget // (C * itemsize)) // _SUBLANE * _SUBLANE)
        tb = balance_tb(tb)
    else:
        # Vocab-scale C: also tile the class (reduction) axis with 128-multiple
        # blocks, accumulated across a trailing 'arbitrary' grid axis.
        tb = balance_tb(min(256, B))
        tc = max(_LANE, (tile_budget // (tb * itemsize)) // _LANE * _LANE)
        if tc >= C:
            tc = C  # full-dim block is always legal (and fits the budget here)
    return tb, tc, pl.cdiv(B, tb), pl.cdiv(C, tc)


def _cce_partial_kernel(y_pred_ref, y_true_ref, out_ref, *,
                        num_rows, num_cols, block_rows, block_cols,
                        mask_rows, mask_cols):
    """Accumulate sum(log(y_pred + eps) * y_true) over this block into out."""
    k = pl.program_id(1)

    @pl.when(k == 0)
    def _init():
        out_ref[...] = jnp.zeros_like(out_ref)

    yp = y_pred_ref[...].astype(jnp.float32)
    yt = y_true_ref[...].astype(jnp.float32)

    # Mask ragged batch / class tails (ops only emitted when a tail exists).
    valid = None
    if mask_rows:
        row_ids = jax.lax.broadcasted_iota(jnp.int32, (block_rows, 1), 0)
        valid = (pl.program_id(0) * block_rows + row_ids) < num_rows
    if mask_cols:
        col_ids = jax.lax.broadcasted_iota(jnp.int32, (1, block_cols), 1)
        col_valid = (k * block_cols + col_ids) < num_cols
        valid = col_valid if valid is None else (valid & col_valid)
    if valid is not None:
        # Clamp y_pred BEFORE the log so out-of-bounds garbage can't turn into
        # NaN/Inf; zero y_true so padding contributes exactly 0.
        yp = jnp.where(valid, yp, 1.0)
        yt = jnp.where(valid, yt, 0.0)

    # TODO(synk): if a v5e bundle dump shows the EUP (log) slot binding before
    # HBM, add a one-hot-specialized path that gathers the target probability
    # per row (B logs instead of B*C).
    contrib = jnp.sum(jnp.log(yp + _EPS) * yt)  # single negate in the wrapper
    out_ref[...] += jnp.broadcast_to(contrib, out_ref.shape)


def cce_loss(y_pred: jax.Array, y_true: jax.Array, *,
             tile_budget_bytes: int = _TILE_BYTES,
             vmem_limit_bytes: int = _VMEM_LIMIT_BYTES) -> jax.Array:
    """Pallas implementation of CCE_loss.forward. Returns a scalar float32."""
    assert y_pred.shape == y_true.shape and y_pred.ndim == 2
    B, C = y_pred.shape
    itemsize = max(jnp.dtype(y_pred.dtype).itemsize,
                   jnp.dtype(y_true.dtype).itemsize)

    tb, tc, grid_b, grid_c = _choose_tiles(B, C, itemsize, tile_budget_bytes)
    mask_rows = (B % tb) != 0
    mask_cols = (C % tc) != 0

    kernel = functools.partial(
        _cce_partial_kernel,
        num_rows=B, num_cols=C, block_rows=tb, block_cols=tc,
        mask_rows=mask_rows, mask_cols=mask_cols)

    bytes_in = B * C * (jnp.dtype(y_pred.dtype).itemsize
                        + jnp.dtype(y_true.dtype).itemsize)

    partials = pl.pallas_call(
        kernel,
        out_shape=jax.ShapeDtypeStruct((grid_b, _SUBLANE, _LANE), jnp.float32),
        grid_spec=pltpu.PrefetchScalarGridSpec(
            num_scalar_prefetch=0,
            grid=(grid_b, grid_c),            # reduction (class) axis last
            in_specs=[
                pl.BlockSpec((tb, tc), lambda i, k: (i, k)),
                pl.BlockSpec((tb, tc), lambda i, k: (i, k)),
            ],
            out_specs=pl.BlockSpec((1, _SUBLANE, _LANE), lambda i, k: (i, 0, 0)),
        ),
        compiler_params=pltpu.CompilerParams(
            dimension_semantics=("parallel", "arbitrary"),
            vmem_limit_bytes=vmem_limit_bytes,
        ),
        cost_estimate=pl.CostEstimate(
            flops=2 * B * C,
            transcendentals=B * C,
            bytes_accessed=bytes_in + grid_b * _SUBLANE * _LANE * 4,
        ),
    )(y_pred, y_true)

    # Tiny (grid_b,) cross-block reduction, single global negate, and the
    # 1/B mean (divide by the true batch size B).
    return -jnp.sum(partials[:, 0, 0]) / jnp.float32(B)


def _cce_ref(y_pred, y_true):
    # Pure-JAX reference (mirrors the PyTorch forward exactly).
    return jnp.mean(jnp.sum(-jnp.log(y_pred + 1e-5) * y_true, axis=1))


if __name__ == "__main__":
    key = jax.random.PRNGKey(0)
    k1, k2, k3, k4 = jax.random.split(key, 4)

    # --- Small test: (B, C) probabilities + one-hot labels. ---
    B, C = 8, 16
    y_pred = jax.nn.softmax(jax.random.normal(k1, (B, C), jnp.float32), axis=1)
    y_true = jax.nn.one_hot(jax.random.randint(k2, (B,), 0, C), C,
                            dtype=jnp.float32)
    loss = jax.block_until_ready(cce_loss(y_pred, y_true))
    ref = jax.block_until_ready(_cce_ref(y_pred, y_true))
    assert jnp.allclose(loss, ref, rtol=1e-5, atol=1e-5), (loss, ref)

    # --- Ragged shapes: grid_b > 1, masked batch tail, soft labels. ---
    B2, C2 = 600, 200
    y_pred2 = jax.nn.softmax(jax.random.normal(k3, (B2, C2), jnp.float32), axis=1)
    y_true2 = jax.nn.softmax(jax.random.normal(k4, (B2, C2), jnp.float32), axis=1)
    loss2 = jax.block_until_ready(cce_loss(y_pred2, y_true2))
    ref2 = jax.block_until_ready(_cce_ref(y_pred2, y_true2))
    assert jnp.allclose(loss2, ref2, rtol=1e-4, atol=1e-4), (loss2, ref2)

    # --- Force class-axis tiling + masked class tail (the vocab-scale-C
    # accumulator path) at a small shape by shrinking the tile budget. ---
    loss3 = jax.block_until_ready(
        cce_loss(y_pred2, y_true2, tile_budget_bytes=4096))
    assert jnp.allclose(loss3, ref2, rtol=1e-4, atol=1e-4), (loss3, ref2)

    print("KERNEL_OK")
</pallas_src>

<mosaic_0001>
module attributes {stable_mosaic.version = 11 : i64} {
  func.func @_cce_partial_kernel(%arg0: i32, %arg1: i32, %arg2: memref<8x16xf32, #tpu.memory_space<vmem>>, %arg3: memref<8x16xf32, #tpu.memory_space<vmem>>, %arg4: memref<1x8x128xf32, #tpu.memory_space<vmem>>) attributes {dimension_semantics = [#tpu.dimension_semantics<parallel>, #tpu.dimension_semantics<arbitrary>], iteration_bounds = array<i64: 1, 1>, scalar_prefetch = 0 : i64, scratch_operands = 0 : i64, tpu.core_type = #tpu.core_type<tc>, window_params = [{transform_indices = @transform_0, window_bounds = array<i64: 8, 16>}, {transform_indices = @transform_1, window_bounds = array<i64: 8, 16>}, {transform_indices = @transform_2, window_bounds = array<i64: 1, 8, 128>}]} {
    %c0_i32 = arith.constant 0 : i32
    %0 = arith.cmpi eq, %arg1, %c0_i32 : i32
    %1 = arith.extui %0 : i1 to i32
    %c0_i32_0 = arith.constant 0 : i32
    %2 = arith.cmpi ne, %1, %c0_i32_0 : i32
    scf.if %2 {
      %cst_11 = arith.constant 0.000000e+00 : f32
      %17 = vector.broadcast %cst_11 : f32 to vector<1x8x128xf32>
      %c0_12 = arith.constant 0 : index
      %c0_13 = arith.constant 0 : index
      %c0_14 = arith.constant 0 : index
      %18 = vector.load %arg4[%c0_12, %c0_13, %c0_14] : memref<1x8x128xf32, #tpu.memory_space<vmem>>, vector<1x8x128xf32>
      tpu.vector_store %arg4[%c0_12, %c0_13, %c0_14], %17 {strides = array<i32>} : memref<1x8x128xf32, #tpu.memory_space<vmem>>, vector<1x8x128xf32>,
    } else {
    }
    %c0 = arith.constant 0 : index
    %c0_1 = arith.constant 0 : index
    %3 = vector.load %arg2[%c0, %c0_1] : memref<8x16xf32, #tpu.memory_space<vmem>>, vector<8x16xf32>
    %c0_2 = arith.constant 0 : index
    %c0_3 = arith.constant 0 : index
    %4 = vector.load %arg3[%c0_2, %c0_3] : memref<8x16xf32, #tpu.memory_space<vmem>>, vector<8x16xf32>
    %cst = arith.constant 9.99999974E-6 : f32
    %5 = vector.broadcast %cst : f32 to vector<8x16xf32>
    %6 = arith.addf %3, %5 : vector<8x16xf32>
    %7 = math.log %6 : vector<8x16xf32>
    %8 = arith.mulf %7, %4 : vector<8x16xf32>
    %9 = vector.shape_cast %8 : vector<8x16xf32> to vector<1x8x16xf32>
    %cst_4 = arith.constant dense<0.000000e+00> : vector<1xf32>
    %10 = vector.multi_reduction <add>, %9, %cst_4 [1, 2] : vector<1x8x16xf32> to vector<1xf32>
    %11 = vector.shape_cast %10 : vector<1xf32> to vector<1x1x1xf32>
    %12 = vector.extract %11[0, 0, 0] : f32 from vector<1x1x1xf32>
    %c0_5 = arith.constant 0 : index
    %c0_6 = arith.constant 0 : index
    %c0_7 = arith.constant 0 : index
    %13 = vector.load %arg4[%c0_5, %c0_6, %c0_7] : memref<1x8x128xf32, #tpu.memory_space<vmem>>, vector<1x8x128xf32>
    %14 = vector.broadcast %12 : f32 to vector<1x8x128xf32>
    %15 = arith.addf %13, %14 : vector<1x8x128xf32>
    %c0_8 = arith.constant 0 : index
    %c0_9 = arith.constant 0 : index
    %c0_10 = arith.constant 0 : index
    %16 = vector.load %arg4[%c0_8, %c0_9, %c0_10] : memref<1x8x128xf32, #tpu.memory_space<vmem>>, vector<1x8x128xf32>
    tpu.vector_store %arg4[%c0_8, %c0_9, %c0_10], %15 {strides = array<i32>} : memref<1x8x128xf32, #tpu.memory_space<vmem>>, vector<1x8x128xf32>,
    return
  }
  func.func @transform_0(%arg0: i32, %arg1: i32) -> (i32, i32) {
    %c0_i32 = arith.constant 0 : i32
    return %arg0, %arg1 : i32, i32
  }
  func.func @transform_1(%arg0: i32, %arg1: i32) -> (i32, i32) {
    %c0_i32 = arith.constant 0 : i32
    return %arg0, %arg1 : i32, i32
  }
  func.func @transform_2(%arg0: i32, %arg1: i32) -> (i32, i32, i32) {
    %c0_i32 = arith.constant 0 : i32
    %c0_i32_0 = arith.constant 0 : i32
    %c0_i32_1 = arith.constant 0 : i32
    return %arg0, %c0_i32, %c0_i32_0 : i32, i32, i32
  }
}

</mosaic_0001>

<llo_original>
// kernel: tpu_custom_call.1
$region0: #{tpu_custom_call.1}
  #allocation0 [shape = 'u32[]', space=smem, size = 0x4, offset = 0x4, fixed_abs, tag = 'smem constant byte address 0x4 - core index']
  #allocation1 [shape = 'u32[144,128]{1,0:T(1,128)}', space=vmem, size = 0x12000, scoped, tag = 'internal scratch']
  %s0 = inlined_call_operand.hbm [shape: f32[8,16], index: 0, kind: input, shape index: {}]
  %s1 = inlined_call_operand.hbm [shape: f32[8,16], index: 1, kind: input, shape index: {}]
  %s2 = inlined_call_operand.hbm [shape: f32[1,8,128], index: 2, kind: output, shape index: {}]
  %s3 = sld [smem:[#allocation0]]
  $region30: #{tpu_custom_call.1} parent=0
    _
  %s5 = ssub.s32 1, %s3
  %s6 = scalar_select 0, %s5, %s3
  $region1: #{tpu_custom_call.1} parent=0
    #allocation2 [shape = 'u8[4096]{0}', space=vmem, size = 0x1000, scoped, tag = 'input window, operand 0, single buffered']
    #allocation3 [shape = 's32[1]{0}', space=sflag, size = 0x4, scoped, tag = 'scoped memory for tpu_custom_call.1']
    #allocation4 [shape = 's32[1]{0}', space=sflag, size = 0x4, scoped, tag = 'scoped memory for tpu_custom_call.1']
    #allocation5 [shape = 'u8[4096]{0}', space=vmem, size = 0x1000, scoped, tag = 'input window, operand 1, single buffered']
    #allocation6 [shape = 's32[1]{0}', space=sflag, size = 0x4, scoped, tag = 'scoped memory for tpu_custom_call.1']
    #allocation7 [shape = 'u8[4096]{0}', space=vmem, size = 0x1000, scoped, tag = 'output window, operand 0, single buffered']
    %7 = vsyncpa [#allocation3], 0
    %8 = vsyncpa [#allocation6], 0
    %9 = vsyncpa [#allocation4], 0
    // Predicated region
    $region2: #{tpu_custom_call.1} parent=1 // pred_check
      _
    $region3: #{tpu_custom_call.1} parent=1 // pred_check_branch
      %11 = sbr.rel (0) target = $region5
    $region4: #{tpu_custom_call.1} parent=1 // pred_region
      %s13 = ssub.s32 128, 128
      %14 = vsyncadd [#allocation3], %s13
      %s16 = sshll.u32 [#allocation2], 4
      %s17 = int_to_ptr.vmem [resolvable:$true] %s16
      %19 = dma.hbm_to_vmem [thread:$0]  %s0, 128, %s17, [#allocation3]
    $region5: #{tpu_custom_call.1} parent=1 // pred_fallthru
      _
    // Predicated region
    $region6: #{tpu_custom_call.1} parent=1 // pred_check
      _
    $region7: #{tpu_custom_call.1} parent=1 // pred_check_branch
      %21 = sbr.rel (0) target = $region9
    $region8: #{tpu_custom_call.1} parent=1 // pred_region
      %s23 = ssub.s32 128, 128
      %24 = vsyncadd [#allocation6], %s23
      %s26 = sshll.u32 [#allocation5], 4
      %s27 = int_to_ptr.vmem [resolvable:$true] %s26
      %29 = dma.hbm_to_vmem [thread:$0]  %s1, 128, %s27, [#allocation6]
    $region9: #{tpu_custom_call.1} parent=1 // pred_fallthru
      _
    // Predicated region
    $region10: #{tpu_custom_call.1} parent=1 // pred_check
      _
    $region11: #{tpu_custom_call.1} parent=1 // pred_check_branch
      %31 = sbr.rel (0) target = $region13
    $region12: #{tpu_custom_call.1} parent=1 // pred_region
      %32 = dma.done [#allocation3], 128
    $region13: #{tpu_custom_call.1} parent=1 // pred_fallthru
      _
    // Predicated region
    $region14: #{tpu_custom_call.1} parent=1 // pred_check
      _
    $region15: #{tpu_custom_call.1} parent=1 // pred_check_branch
      %34 = sbr.rel (0) target = $region17
    $region16: #{tpu_custom_call.1} parent=1 // pred_region
      %35 = dma.done [#allocation6], 128
    $region17: #{tpu_custom_call.1} parent=1 // pred_fallthru
      _
    %p36 = scmp.eq.s32.totalorder 0, 0
    // Predicated region
    $region18: #{tpu_custom_call.1} parent=1 // pred_check
      %p37 = pneg %p36
    $region19: #{tpu_custom_call.1} parent=1 // pred_check_branch
      %39 = sbr.rel (%p37) target = $region21
    $region20: #{tpu_custom_call.1} parent=1 // pred_region
      %40 = vst [vmem:[#allocation7] sm:$0xff] 0.0
    $region21: #{tpu_custom_call.1} parent=1 // pred_fallthru
      _
    %v41 = vld [vmem:[#allocation2] sm:$0xff]
    %v42 = vld [vmem:[#allocation5] sm:$0xff]
    %v43 = vadd.f32 %v41, 1e-05
    %v44 = vlog2.pop %v43
    %v45 = vmul.f32 %v44, 0.6931472
    %v46 = vmul.f32 %v45, %v42
    %vm47 = vcmask 130048
    %v48 = vsel %vm47, %v46, 0.0
    %49 = vadd.xlane.f32.xlu0 %v48
    %v50 = vpop.xlane.xlu0 %49
    %v51 = vrot.slane %v50, 4
    %v52 = vadd.f32 %v50, %v51
    %v53 = vrot.slane %v52, 2
    %v54 = vadd.f32 %v52, %v53
    %v55 = vrot.slane %v54, 1
    %v56 = vadd.f32 %v54, %v55
    %s57 = vtos %v56
    %v58 = vld [vmem:[#allocation7] sm:$0xff]
    %v59 = vstv %s57
    %v60 = vadd.f32 %v58, %v59
    %61 = vst [vmem:[#allocation7] sm:$0xff] %v60
    // Predicated region
    $region22: #{tpu_custom_call.1} parent=1 // pred_check
      _
    $region23: #{tpu_custom_call.1} parent=1 // pred_check_branch
      %63 = sbr.rel (0) target = $region25
    $region24: #{tpu_custom_call.1} parent=1 // pred_region
      %s65 = ssub.s32 128, 128
      %66 = vsyncadd [#allocation4], %s65
      %s68 = sshll.u32 [#allocation7], 4
      %s69 = int_to_ptr.vmem [resolvable:$true] %s68
      %71 = dma.vmem_to_hbm [thread:$0]  %s69, 128, %s2, [#allocation4]
    $region25: #{tpu_custom_call.1} parent=1 // pred_fallthru
      _
    // Predicated region
    $region26: #{tpu_custom_call.1} parent=1 // pred_check
      _
    $region27: #{tpu_custom_call.1} parent=1 // pred_check_branch
      %73 = sbr.rel (0) target = $region29
    $region28: #{tpu_custom_call.1} parent=1 // pred_region
      %74 = dma.done [#allocation4], 128
    $region29: #{tpu_custom_call.1} parent=1 // pred_fallthru
      _
    %75 = vsyncpa [#allocation3], 1
    %76 = vsyncpa [#allocation6], 1
    %77 = vsyncpa [#allocation4], 1

</llo_original>
